<compile_context>
chip_gen: v5e
topology: v5e:2x2
jax: 0.10.0
libtpu: 0.0.40
codegen_flags: <defaults>
</compile_context>

<pallas_src>
import functools

import jax
import jax.numpy as jnp
from jax import lax
from jax.experimental import pallas as pl
from jax.experimental.pallas import tpu as pltpu


# ---------------------------------------------------------------------------
# Phase 1: gating matmul + softmax + top-1 / gumbel-top-2 selection (parallel).
# ---------------------------------------------------------------------------
def _gate_select_kernel(x_ref, w_ref, gn_ref, gates_ref, idx1_ref, idx2_ref,
                        g1_ref, g2_ref):
    T, E = gates_ref.shape

    # Native-dtype operands on the MXU, f32 accumulation (no f32 upcast).
    logits = jnp.dot(x_ref[...], w_ref[...],
                     preferred_element_type=jnp.float32)          # (T, E) f32

    # Softmax over experts in f32.
    z = logits - jnp.max(logits, axis=1, keepdims=True)
    ez = jnp.exp(z)
    gates = ez / jnp.sum(ez, axis=1, keepdims=True)               # (T, E) f32

    iota_e = lax.broadcasted_iota(jnp.int32, (T, E), 1)

    # top-1 expert (first maximal index).
    m1 = jnp.max(gates, axis=1, keepdims=True)
    idx1 = jnp.min(jnp.where(gates == m1, iota_e, E), axis=1, keepdims=True)
    mask1 = iota_e == idx1

    # top-2 expert: argmax of gumbel-noised logits with the top-1 masked out.
    lw = logits + gn_ref[...]
    le1 = jnp.where(mask1, -jnp.inf, lw)
    m2 = jnp.max(le1, axis=1, keepdims=True)
    idx2 = jnp.min(jnp.where(le1 == m2, iota_e, E), axis=1, keepdims=True)
    mask2 = iota_e == idx2

    gates_ref[...] = gates
    idx1_ref[...] = idx1
    idx2_ref[...] = idx2
    g1_ref[...] = m1                                               # gates[t, idx1]
    g2_ref[...] = jnp.sum(jnp.where(mask2, gates, 0.0), axis=1, keepdims=True)


# ---------------------------------------------------------------------------
# Phase 2: carried cumsum over tokens, capacity masking, flat slot indices
# (serial grid; carries + the hoisted lower-triangular matrix live in scratch).
# ---------------------------------------------------------------------------
def _locations_kernel(capacity, idx1_ref, idx2_ref, g1_ref, g2_ref, tot1_ref,
                      flat1_ref, flat2_ref, gw1_ref, gw2_ref,
                      carry1_ref, carry2_ref, tri_ref):
    T = idx1_ref.shape[0]
    E = tot1_ref.shape[1]
    t = pl.program_id(0)
    cap_f = jnp.float32(capacity)

    @pl.when(t == 0)
    def _():
        carry1_ref[...] = jnp.zeros_like(carry1_ref)
        carry2_ref[...] = jnp.zeros_like(carry2_ref)
        r = lax.broadcasted_iota(jnp.int32, (T, T), 0)
        c = lax.broadcasted_iota(jnp.int32, (T, T), 1)
        tri_ref[...] = (r >= c).astype(jnp.bfloat16)   # built once, reused

    idx1 = idx1_ref[...]                                # (T, 1) int32
    idx2 = idx2_ref[...]
    g1raw = g1_ref[...]                                 # (T, 1) f32
    g2raw = g2_ref[...]

    iota_e = lax.broadcasted_iota(jnp.int32, (T, E), 1)
    mask1 = iota_e == idx1
    mask2 = iota_e == idx2
    m1b = mask1.astype(jnp.bfloat16)
    m2b = mask2.astype(jnp.bfloat16)
    m1f = mask1.astype(jnp.float32)
    m2f = mask2.astype(jnp.float32)

    # Per-tile inclusive cumsum via bf16 lower-tri matmul (f32 accumulation),
    # plus the per-expert running counts carried from previous tiles.
    tri = tri_ref[...]
    cum1 = jnp.dot(tri, m1b, preferred_element_type=jnp.float32)
    cum2 = jnp.dot(tri, m2b, preferred_element_type=jnp.float32)
    loc1 = cum1 - 1.0 + carry1_ref[...]
    loc2 = cum2 - 1.0 + carry2_ref[...] + tot1_ref[...]

    carry1_ref[...] = carry1_ref[...] + jnp.sum(m1f, axis=0, keepdims=True)
    carry2_ref[...] = carry2_ref[...] + jnp.sum(m2f, axis=0, keepdims=True)

    # Capacity masking (uses pre-capacity masks for the cumsum, like the ref).
    keep1 = m1f * (loc1 < cap_f).astype(jnp.float32)
    keep2 = m2f * (loc2 < cap_f).astype(jnp.float32)

    loc1_s = jnp.sum(loc1 * keep1, axis=1, keepdims=True)          # (T, 1)
    loc2_s = jnp.sum(loc2 * keep2, axis=1, keepdims=True)
    k1 = jnp.sum(keep1, axis=1, keepdims=True)                     # 0 or 1
    k2 = jnp.sum(keep2, axis=1, keepdims=True)

    gates1_s = g1raw * k1
    gates2_s = g2raw * k2
    denom = jnp.maximum(gates1_s + gates2_s, jnp.finfo(jnp.float32).eps)
    gw1_ref[...] = gates1_s / denom
    gw2_ref[...] = gates2_s / denom
    flat1_ref[...] = idx1 * capacity + loc1_s.astype(jnp.int32)
    flat2_ref[...] = idx2 * capacity + loc2_s.astype(jnp.int32)


# ---------------------------------------------------------------------------
# Phase 3: lane-dense (S, E*C) combine-weight construction (parallel).
# ---------------------------------------------------------------------------
def _combine_kernel(flat1_ref, flat2_ref, gw1_ref, gw2_ref, comb_ref):
    T, EC = comb_ref.shape
    lane = lax.broadcasted_iota(jnp.int32, (T, EC), 1)
    f1 = flat1_ref[...]
    f2 = flat2_ref[...]
    g1 = gw1_ref[...]
    g2 = gw2_ref[...]
    comb = jnp.where(lane == f1, g1, 0.0) + jnp.where(lane == f2, g2, 0.0)
    comb_ref[...] = comb.astype(comb_ref.dtype)


# ---------------------------------------------------------------------------
# Helpers.
# ---------------------------------------------------------------------------
def _pick_tile(num_tokens, max_rows):
    """Largest multiple-of-8 divisor of num_tokens that is <= max_rows."""
    max_rows = int(max(8, min(max_rows, num_tokens)))
    if num_tokens <= max_rows:
        return num_tokens
    best = None
    t = 8
    while t <= max_rows:
        if num_tokens % t == 0:
            best = t
        t += 8
    return best if best is not None else num_tokens


def _mosaic_params(dimension_semantics, vmem_bytes=0):
    kwargs = dict(dimension_semantics=dimension_semantics)
    # Only raise the scoped-VMEM limit when the working set actually needs it
    # (keeps the request within v7x's 64 MiB physical VMEM).
    if vmem_bytes > 32 * 1024 * 1024:
        kwargs["vmem_limit_bytes"] = int(min(vmem_bytes, 64 * 1024 * 1024))
    return pltpu.CompilerParams(**kwargs)


def _row_spec(rows, cols):
    return pl.BlockSpec((rows, cols), lambda t: (t, 0))


# ---------------------------------------------------------------------------
# Wrapper: Top2Gate.forward
# ---------------------------------------------------------------------------
@jax.jit
def top2gate(x, wg_weight, gumbel_noise):
    """x: (S, M); wg_weight: (E, M) torch-layout Linear weight; gumbel: (S, E).

    Returns (l_aux, combine_weights, dispatch_mask) matching Top2Gate.forward.
    """
    S, M = x.shape
    E = wg_weight.shape[0]
    assert S % E == 0, "num_tokens must be divisible by num_experts"
    C = 2 * S // E
    EC = E * C

    w = wg_weight.T.astype(x.dtype)                 # (M, E), native MXU dtype
    gnoise = gumbel_noise.astype(jnp.float32)

    x_bytes = jnp.dtype(x.dtype).itemsize
    out_bytes = x_bytes
    f32, i32 = jnp.float32, jnp.int32

    # Tile sizes: bound phase-1's double-buffered x tile and phase-3's
    # double-buffered (rows, E*C) output tile so they fit every generation's
    # default scoped-VMEM budget (v7x has only 64 MiB total).
    rows_a = max(8, (16 * 1024 * 1024) // max(1, 2 * M * x_bytes))
    tile_a = _pick_tile(S, min(512, rows_a))
    rows_c = max(8, (24 * 1024 * 1024) // max(1, 2 * EC * (out_bytes + 4)))
    tile_c = _pick_tile(S, min(512, rows_c))
    nt_a = S // tile_a
    nt_c = S // tile_c

    # ---- phase 1: logits, softmax, top-1 / top-2 (parallel over tiles) ----
    gates, idx1, idx2, g1raw, g2raw = pl.pallas_call(
        _gate_select_kernel,
        grid=(nt_a,),
        in_specs=[
            _row_spec(tile_a, M),
            pl.BlockSpec((M, E), lambda t: (0, 0)),
            _row_spec(tile_a, E),
        ],
        out_specs=(
            _row_spec(tile_a, E),
            _row_spec(tile_a, 1),
            _row_spec(tile_a, 1),
            _row_spec(tile_a, 1),
            _row_spec(tile_a, 1),
        ),
        out_shape=(
            jax.ShapeDtypeStruct((S, E), f32),
            jax.ShapeDtypeStruct((S, 1), i32),
            jax.ShapeDtypeStruct((S, 1), i32),
            jax.ShapeDtypeStruct((S, 1), f32),
            jax.ShapeDtypeStruct((S, 1), f32),
        ),
        compiler_params=_mosaic_params(
            ("parallel",),
            vmem_bytes=2 * tile_a * (M * x_bytes + 8 * E) + M * E * x_bytes),
    )(x, w, gnoise)

    # Tiny O(S*E) glue (never touches the big tensor): pre-capacity per-expert
    # top-1 counts and the auxiliary load-balance loss.
    total1 = jnp.sum(
        (jnp.arange(E, dtype=i32)[None, :] == idx1).astype(f32),
        axis=0, keepdims=True)                                     # (1, E)
    me = jnp.mean(gates, axis=0)
    ce = total1[0] / jnp.float32(S)
    l_aux = jnp.mean(me * ce).astype(x.dtype)

    # ---- phase 2: carried cumsum / capacity / flat slot index (serial) ----
    flat1, flat2, gw1, gw2 = pl.pallas_call(
        functools.partial(_locations_kernel, C),
        grid=(nt_a,),
        in_specs=[
            _row_spec(tile_a, 1),
            _row_spec(tile_a, 1),
            _row_spec(tile_a, 1),
            _row_spec(tile_a, 1),
            pl.BlockSpec((1, E), lambda t: (0, 0)),
        ],
        out_specs=(
            _row_spec(tile_a, 1),
            _row_spec(tile_a, 1),
            _row_spec(tile_a, 1),
            _row_spec(tile_a, 1),
        ),
        out_shape=(
            jax.ShapeDtypeStruct((S, 1), i32),
            jax.ShapeDtypeStruct((S, 1), i32),
            jax.ShapeDtypeStruct((S, 1), f32),
            jax.ShapeDtypeStruct((S, 1), f32),
        ),
        scratch_shapes=[
            pltpu.VMEM((1, E), f32),                  # carry: cumsum of mask1
            pltpu.VMEM((1, E), f32),                  # carry: cumsum of mask2
            pltpu.VMEM((tile_a, tile_a), jnp.bfloat16),  # hoisted lower-tri
        ],
        compiler_params=_mosaic_params(("arbitrary",)),
    )(idx1, idx2, g1raw, g2raw, total1)

    # ---- phase 3: lane-dense combine weights (parallel over tiles) --------
    comb_flat = pl.pallas_call(
        _combine_kernel,
        grid=(nt_c,),
        in_specs=[
            _row_spec(tile_c, 1),
            _row_spec(tile_c, 1),
            _row_spec(tile_c, 1),
            _row_spec(tile_c, 1),
        ],
        out_specs=_row_spec(tile_c, EC),
        out_shape=jax.ShapeDtypeStruct((S, EC), x.dtype),
        compiler_params=_mosaic_params(
            ("parallel",), vmem_bytes=2 * tile_c * EC * (out_bytes + 4)),
    )(flat1, flat2, gw1, gw2)

    combine_weights = comb_flat.reshape(S, E, C)

    # dispatch_mask == (f32 combine != 0), but built from the tiny per-token
    # f32 scalars so the (S, E, C) tensor is never re-read from HBM.
    lane = jnp.arange(EC, dtype=i32)[None, :]
    disp_flat = ((lane == flat1) & (gw1 != 0.0)) | ((lane == flat2) & (gw2 != 0.0))
    dispatch_mask = disp_flat.reshape(S, E, C)

    return l_aux, combine_weights, dispatch_mask


if __name__ == "__main__":
    key = jax.random.PRNGKey(0)
    k_x, k_w, k_g = jax.random.split(key, 3)

    num_tokens, model_dim, num_experts = 16, 32, 4   # capacity = 2*16//4 = 8

    x = jax.random.normal(k_x, (num_tokens, model_dim), dtype=jnp.float32)

    # Deterministic init of nn.Linear(model_dim, num_experts, bias=False):
    # torch layout (num_experts, model_dim), uniform(-1/sqrt(M), 1/sqrt(M)).
    bound = 1.0 / (model_dim ** 0.5)
    wg_weight = jax.random.uniform(
        k_w, (num_experts, model_dim), jnp.float32, -bound, bound)

    # Gumbel noise (equivalent of gumbel_rsample) sampled outside the kernel.
    gnoise = jax.random.gumbel(k_g, (num_tokens, num_experts), dtype=jnp.float32)

    l_aux, combine_weights, dispatch_mask = top2gate(x, wg_weight, gnoise)
    jax.block_until_ready((l_aux, combine_weights, dispatch_mask))
    print("KERNEL_OK")
</pallas_src>

<mosaic_0001>
module attributes {stable_mosaic.version = 11 : i64} {
  func.func @_locations_kernel(%arg0: i32, %arg1: memref<16x1xi32, #tpu.memory_space<vmem>>, %arg2: memref<16x1xi32, #tpu.memory_space<vmem>>, %arg3: memref<16x1xf32, #tpu.memory_space<vmem>>, %arg4: memref<16x1xf32, #tpu.memory_space<vmem>>, %arg5: memref<1x4xf32, #tpu.memory_space<vmem>>, %arg6: memref<16x1xi32, #tpu.memory_space<vmem>>, %arg7: memref<16x1xi32, #tpu.memory_space<vmem>>, %arg8: memref<16x1xf32, #tpu.memory_space<vmem>>, %arg9: memref<16x1xf32, #tpu.memory_space<vmem>>, %arg10: memref<1x4xf32, #tpu.memory_space<vmem>>, %arg11: memref<1x4xf32, #tpu.memory_space<vmem>>, %arg12: memref<16x16xbf16, #tpu.memory_space<vmem>>) attributes {dimension_semantics = [#tpu.dimension_semantics<arbitrary>], iteration_bounds = array<i64: 1>, scalar_prefetch = 0 : i64, scratch_operands = 3 : i64, tpu.core_type = #tpu.core_type<tc>, window_params = [{transform_indices = @transform_0, window_bounds = array<i64: 16, 1>}, {transform_indices = @transform_1, window_bounds = array<i64: 16, 1>}, {transform_indices = @transform_2, window_bounds = array<i64: 16, 1>}, {transform_indices = @transform_3, window_bounds = array<i64: 16, 1>}, {pipeline_mode = #tpu.pipeline_mode<synchronous>, transform_indices = @transform_4, window_bounds = array<i64: 1, 4>}, {transform_indices = @transform_5, window_bounds = array<i64: 16, 1>}, {transform_indices = @transform_6, window_bounds = array<i64: 16, 1>}, {transform_indices = @transform_7, window_bounds = array<i64: 16, 1>}, {transform_indices = @transform_8, window_bounds = array<i64: 16, 1>}]} {
    %c0_i32 = arith.constant 0 : i32
    %0 = arith.cmpi eq, %arg0, %c0_i32 : i32
    %1 = arith.extui %0 : i1 to i32
    %c0_i32_0 = arith.constant 0 : i32
    %2 = arith.cmpi ne, %1, %c0_i32_0 : i32
    scf.if %2 {
      %cst_45 = arith.constant 0.000000e+00 : f32
      %87 = vector.broadcast %cst_45 : f32 to vector<1x4xf32>
      %c0_46 = arith.constant 0 : index
      %c0_47 = arith.constant 0 : index
      %88 = vector.load %arg10[%c0_46, %c0_47] : memref<1x4xf32, #tpu.memory_space<vmem>>, vector<1x4xf32>
      tpu.vector_store %arg10[%c0_46, %c0_47], %87 {strides = array<i32>} : memref<1x4xf32, #tpu.memory_space<vmem>>, vector<1x4xf32>,
      %cst_48 = arith.constant 0.000000e+00 : f32
      %89 = vector.broadcast %cst_48 : f32 to vector<1x4xf32>
      %c0_49 = arith.constant 0 : index
      %c0_50 = arith.constant 0 : index
      %90 = vector.load %arg11[%c0_49, %c0_50] : memref<1x4xf32, #tpu.memory_space<vmem>>, vector<1x4xf32>
      tpu.vector_store %arg11[%c0_49, %c0_50], %89 {strides = array<i32>} : memref<1x4xf32, #tpu.memory_space<vmem>>, vector<1x4xf32>,
      %91 = tpu.iota {dimensions = array<i32: 0>} : vector<16x16xi32>
      %92 = tpu.iota {dimensions = array<i32: 1>} : vector<16x16xi32>
      %93 = arith.cmpi sge, %91, %92 : vector<16x16xi32>
      %94 = arith.extui %93 : vector<16x16xi1> to vector<16x16xi32>
      %95 = arith.sitofp %94 : vector<16x16xi32> to vector<16x16xf32>
      %96 = arith.truncf %95 : vector<16x16xf32> to vector<16x16xbf16>
      %c0_51 = arith.constant 0 : index
      %c0_52 = arith.constant 0 : index
      %97 = vector.load %arg12[%c0_51, %c0_52] : memref<16x16xbf16, #tpu.memory_space<vmem>>, vector<16x16xbf16>
      tpu.vector_store %arg12[%c0_51, %c0_52], %96 {strides = array<i32>} : memref<16x16xbf16, #tpu.memory_space<vmem>>, vector<16x16xbf16>,
    } else {
    }
    %c0 = arith.constant 0 : index
    %c0_1 = arith.constant 0 : index
    %3 = vector.load %arg1[%c0, %c0_1] : memref<16x1xi32, #tpu.memory_space<vmem>>, vector<16x1xi32>
    %c0_2 = arith.constant 0 : index
    %c0_3 = arith.constant 0 : index
    %4 = vector.load %arg2[%c0_2, %c0_3] : memref<16x1xi32, #tpu.memory_space<vmem>>, vector<16x1xi32>
    %c0_4 = arith.constant 0 : index
    %c0_5 = arith.constant 0 : index
    %5 = vector.load %arg3[%c0_4, %c0_5] : memref<16x1xf32, #tpu.memory_space<vmem>>, vector<16x1xf32>
    %c0_6 = arith.constant 0 : index
    %c0_7 = arith.constant 0 : index
    %6 = vector.load %arg4[%c0_6, %c0_7] : memref<16x1xf32, #tpu.memory_space<vmem>>, vector<16x1xf32>
    %7 = tpu.iota {dimensions = array<i32: 1>} : vector<16x4xi32>
    %8 = vector.broadcast %3 : vector<16x1xi32> to vector<16x4xi32>
    %9 = arith.cmpi eq, %7, %8 : vector<16x4xi32>
    %10 = vector.broadcast %4 : vector<16x1xi32> to vector<16x4xi32>
    %11 = arith.cmpi eq, %7, %10 : vector<16x4xi32>
    %12 = arith.extui %9 : vector<16x4xi1> to vector<16x4xi32>
    %13 = arith.sitofp %12 : vector<16x4xi32> to vector<16x4xf32>
    %14 = arith.truncf %13 : vector<16x4xf32> to vector<16x4xbf16>
    %15 = arith.extui %11 : vector<16x4xi1> to vector<16x4xi32>
    %16 = arith.sitofp %15 : vector<16x4xi32> to vector<16x4xf32>
    %17 = arith.truncf %16 : vector<16x4xf32> to vector<16x4xbf16>
    %18 = arith.extui %9 : vector<16x4xi1> to vector<16x4xi32>
    %19 = arith.sitofp %18 : vector<16x4xi32> to vector<16x4xf32>
    %20 = arith.extui %11 : vector<16x4xi1> to vector<16x4xi32>
    %21 = arith.sitofp %20 : vector<16x4xi32> to vector<16x4xf32>
    %c0_8 = arith.constant 0 : index
    %c0_9 = arith.constant 0 : index
    %22 = vector.load %arg12[%c0_8, %c0_9] : memref<16x16xbf16, #tpu.memory_space<vmem>>, vector<16x16xbf16>
    %cst = arith.constant dense<0.000000e+00> : vector<16x4xf32>
    %23 = tpu.matmul %22, %14, %cst {dimension_numbers = #tpu.dot_dimension_numbers<[1], [0], [0], [1], [0, 0, 1, 1], [], []>} : vector<16x16xbf16>, vector<16x4xbf16>, vector<16x4xf32> -> vector<16x4xf32>
    %cst_10 = arith.constant dense<0.000000e+00> : vector<16x4xf32>
    %24 = tpu.matmul %22, %17, %cst_10 {dimension_numbers = #tpu.dot_dimension_numbers<[1], [0], [0], [1], [0, 0, 1, 1], [], []>} : vector<16x16xbf16>, vector<16x4xbf16>, vector<16x4xf32> -> vector<16x4xf32>
    %cst_11 = arith.constant 1.000000e+00 : f32
    %25 = vector.broadcast %cst_11 : f32 to vector<16x4xf32>
    %26 = arith.subf %23, %25 : vector<16x4xf32>
    %c0_12 = arith.constant 0 : index
    %c0_13 = arith.constant 0 : index
    %27 = vector.load %arg10[%c0_12, %c0_13] : memref<1x4xf32, #tpu.memory_space<vmem>>, vector<1x4xf32>
    %28 = vector.broadcast %27 : vector<1x4xf32> to vector<16x4xf32>
    %29 = arith.addf %26, %28 : vector<16x4xf32>
    %cst_14 = arith.constant 1.000000e+00 : f32
    %30 = vector.broadcast %cst_14 : f32 to vector<16x4xf32>
    %31 = arith.subf %24, %30 : vector<16x4xf32>
    %c0_15 = arith.constant 0 : index
    %c0_16 = arith.constant 0 : index
    %32 = vector.load %arg11[%c0_15, %c0_16] : memref<1x4xf32, #tpu.memory_space<vmem>>, vector<1x4xf32>
    %33 = vector.broadcast %32 : vector<1x4xf32> to vector<16x4xf32>
    %34 = arith.addf %31, %33 : vector<16x4xf32>
    %c0_17 = arith.constant 0 : index
    %c0_18 = arith.constant 0 : index
    %35 = vector.load %arg5[%c0_17, %c0_18] : memref<1x4xf32, #tpu.memory_space<vmem>>, vector<1x4xf32>
    %36 = vector.broadcast %35 : vector<1x4xf32> to vector<16x4xf32>
    %37 = arith.addf %34, %36 : vector<16x4xf32>
    %c0_19 = arith.constant 0 : index
    %c0_20 = arith.constant 0 : index
    %38 = vector.load %arg10[%c0_19, %c0_20] : memref<1x4xf32, #tpu.memory_space<vmem>>, vector<1x4xf32>
    %cst_21 = arith.constant dense<0.000000e+00> : vector<4xf32>
    %39 = vector.multi_reduction <add>, %19, %cst_21 [0] : vector<16x4xf32> to vector<4xf32>
    %40 = vector.shape_cast %39 : vector<4xf32> to vector<1x4xf32>
    %41 = arith.addf %38, %40 : vector<1x4xf32>
    %c0_22 = arith.constant 0 : index
    %c0_23 = arith.constant 0 : index
    %42 = vector.load %arg10[%c0_22, %c0_23] : memref<1x4xf32, #tpu.memory_space<vmem>>, vector<1x4xf32>
    tpu.vector_store %arg10[%c0_22, %c0_23], %41 {strides = array<i32>} : memref<1x4xf32, #tpu.memory_space<vmem>>, vector<1x4xf32>,
    %c0_24 = arith.constant 0 : index
    %c0_25 = arith.constant 0 : index
    %43 = vector.load %arg11[%c0_24, %c0_25] : memref<1x4xf32, #tpu.memory_space<vmem>>, vector<1x4xf32>
    %cst_26 = arith.constant dense<0.000000e+00> : vector<4xf32>
    %44 = vector.multi_reduction <add>, %21, %cst_26 [0] : vector<16x4xf32> to vector<4xf32>
    %45 = vector.shape_cast %44 : vector<4xf32> to vector<1x4xf32>
    %46 = arith.addf %43, %45 : vector<1x4xf32>
    %c0_27 = arith.constant 0 : index
    %c0_28 = arith.constant 0 : index
    %47 = vector.load %arg11[%c0_27, %c0_28] : memref<1x4xf32, #tpu.memory_space<vmem>>, vector<1x4xf32>
    tpu.vector_store %arg11[%c0_27, %c0_28], %46 {strides = array<i32>} : memref<1x4xf32, #tpu.memory_space<vmem>>, vector<1x4xf32>,
    %cst_29 = arith.constant 8.000000e+00 : f32
    %48 = vector.broadcast %cst_29 : f32 to vector<16x4xf32>
    %49 = arith.cmpf olt, %29, %48 : vector<16x4xf32>
    %50 = arith.extui %49 : vector<16x4xi1> to vector<16x4xi32>
    %51 = arith.sitofp %50 : vector<16x4xi32> to vector<16x4xf32>
    %52 = arith.mulf %19, %51 : vector<16x4xf32>
    %cst_30 = arith.constant 8.000000e+00 : f32
    %53 = vector.broadcast %cst_30 : f32 to vector<16x4xf32>
    %54 = arith.cmpf olt, %37, %53 : vector<16x4xf32>
    %55 = arith.extui %54 : vector<16x4xi1> to vector<16x4xi32>
    %56 = arith.sitofp %55 : vector<16x4xi32> to vector<16x4xf32>
    %57 = arith.mulf %21, %56 : vector<16x4xf32>
    %58 = arith.mulf %29, %52 : vector<16x4xf32>
    %cst_31 = arith.constant dense<0.000000e+00> : vector<16xf32>
    %59 = vector.multi_reduction <add>, %58, %cst_31 [1] : vector<16x4xf32> to vector<16xf32>
    %60 = vector.shape_cast %59 : vector<16xf32> to vector<16x1xf32>
    %61 = arith.mulf %37, %57 : vector<16x4xf32>
    %cst_32 = arith.constant dense<0.000000e+00> : vector<16xf32>
    %62 = vector.multi_reduction <add>, %61, %cst_32 [1] : vector<16x4xf32> to vector<16xf32>
    %63 = vector.shape_cast %62 : vector<16xf32> to vector<16x1xf32>
    %cst_33 = arith.constant dense<0.000000e+00> : vector<16xf32>
    %64 = vector.multi_reduction <add>, %52, %cst_33 [1] : vector<16x4xf32> to vector<16xf32>
    %65 = vector.shape_cast %64 : vector<16xf32> to vector<16x1xf32>
    %cst_34 = arith.constant dense<0.000000e+00> : vector<16xf32>
    %66 = vector.multi_reduction <add>, %57, %cst_34 [1] : vector<16x4xf32> to vector<16xf32>
    %67 = vector.shape_cast %66 : vector<16xf32> to vector<16x1xf32>
    %68 = arith.mulf %5, %65 : vector<16x1xf32>
    %69 = arith.mulf %6, %67 : vector<16x1xf32>
    %70 = arith.addf %68, %69 : vector<16x1xf32>
    %cst_35 = arith.constant 1.1920929E-7 : f32
    %71 = vector.broadcast %cst_35 : f32 to vector<16x1xf32>
    %72 = arith.maximumf %70, %71 : vector<16x1xf32>
    %73 = arith.divf %68, %72 : vector<16x1xf32>
    %c0_36 = arith.constant 0 : index
    %c0_37 = arith.constant 0 : index
    %74 = vector.load %arg8[%c0_36, %c0_37] : memref<16x1xf32, #tpu.memory_space<vmem>>, vector<16x1xf32>
    tpu.vector_store %arg8[%c0_36, %c0_37], %73 {strides = array<i32>} : memref<16x1xf32, #tpu.memory_space<vmem>>, vector<16x1xf32>,
    %75 = arith.divf %69, %72 : vector<16x1xf32>
    %c0_38 = arith.constant 0 : index
    %c0_39 = arith.constant 0 : index
    %76 = vector.load %arg9[%c0_38, %c0_39] : memref<16x1xf32, #tpu.memory_space<vmem>>, vector<16x1xf32>
    tpu.vector_store %arg9[%c0_38, %c0_39], %75 {strides = array<i32>} : memref<16x1xf32, #tpu.memory_space<vmem>>, vector<16x1xf32>,
    %c8_i32 = arith.constant 8 : i32
    %77 = vector.broadcast %c8_i32 : i32 to vector<16x1xi32>
    %78 = arith.muli %3, %77 : vector<16x1xi32>
    %79 = arith.fptosi %60 : vector<16x1xf32> to vector<16x1xi32>
    %80 = arith.addi %78, %79 : vector<16x1xi32>
    %c0_40 = arith.constant 0 : index
    %c0_41 = arith.constant 0 : index
    %81 = vector.load %arg6[%c0_40, %c0_41] : memref<16x1xi32, #tpu.memory_space<vmem>>, vector<16x1xi32>
    tpu.vector_store %arg6[%c0_40, %c0_41], %80 {strides = array<i32>} : memref<16x1xi32, #tpu.memory_space<vmem>>, vector<16x1xi32>,
    %c8_i32_42 = arith.constant 8 : i32
    %82 = vector.broadcast %c8_i32_42 : i32 to vector<16x1xi32>
    %83 = arith.muli %4, %82 : vector<16x1xi32>
    %84 = arith.fptosi %63 : vector<16x1xf32> to vector<16x1xi32>
    %85 = arith.addi %83, %84 : vector<16x1xi32>
    %c0_43 = arith.constant 0 : index
    %c0_44 = arith.constant 0 : index
    %86 = vector.load %arg7[%c0_43, %c0_44] : memref<16x1xi32, #tpu.memory_space<vmem>>, vector<16x1xi32>
    tpu.vector_store %arg7[%c0_43, %c0_44], %85 {strides = array<i32>} : memref<16x1xi32, #tpu.memory_space<vmem>>, vector<16x1xi32>,
    return
  }
  func.func @transform_0(%arg0: i32) -> (i32, i32) {
    %c0_i32 = arith.constant 0 : i32
    %c0_i32_0 = arith.constant 0 : i32
    return %arg0, %c0_i32 : i32, i32
  }
  func.func @transform_1(%arg0: i32) -> (i32, i32) {
    %c0_i32 = arith.constant 0 : i32
    %c0_i32_0 = arith.constant 0 : i32
    return %arg0, %c0_i32 : i32, i32
  }
  func.func @transform_2(%arg0: i32) -> (i32, i32) {
    %c0_i32 = arith.constant 0 : i32
    %c0_i32_0 = arith.constant 0 : i32
    return %arg0, %c0_i32 : i32, i32
  }
  func.func @transform_3(%arg0: i32) -> (i32, i32) {
    %c0_i32 = arith.constant 0 : i32
    %c0_i32_0 = arith.constant 0 : i32
    return %arg0, %c0_i32 : i32, i32
  }
  func.func @transform_4(%arg0: i32) -> (i32, i32) {
    %c0_i32 = arith.constant 0 : i32
    %c0_i32_0 = arith.constant 0 : i32
    %c0_i32_1 = arith.constant 0 : i32
    return %c0_i32, %c0_i32_0 : i32, i32
  }
  func.func @transform_5(%arg0: i32) -> (i32, i32) {
    %c0_i32 = arith.constant 0 : i32
    %c0_i32_0 = arith.constant 0 : i32
    return %arg0, %c0_i32 : i32, i32
  }
  func.func @transform_6(%arg0: i32) -> (i32, i32) {
    %c0_i32 = arith.constant 0 : i32
    %c0_i32_0 = arith.constant 0 : i32
    return %arg0, %c0_i32 : i32, i32
  }
  func.func @transform_7(%arg0: i32) -> (i32, i32) {
    %c0_i32 = arith.constant 0 : i32
    %c0_i32_0 = arith.constant 0 : i32
    return %arg0, %c0_i32 : i32, i32
  }
  func.func @transform_8(%arg0: i32) -> (i32, i32) {
    %c0_i32 = arith.constant 0 : i32
    %c0_i32_0 = arith.constant 0 : i32
    return %arg0, %c0_i32 : i32, i32
  }
}

module attributes {stable_mosaic.version = 11 : i64} {
  func.func @_gate_select_kernel(%arg0: i32, %arg1: memref<16x32xf32, #tpu.memory_space<vmem>>, %arg2: memref<32x4xf32, #tpu.memory_space<vmem>>, %arg3: memref<16x4xf32, #tpu.memory_space<vmem>>, %arg4: memref<16x4xf32, #tpu.memory_space<vmem>>, %arg5: memref<16x1xi32, #tpu.memory_space<vmem>>, %arg6: memref<16x1xi32, #tpu.memory_space<vmem>>, %arg7: memref<16x1xf32, #tpu.memory_space<vmem>>, %arg8: memref<16x1xf32, #tpu.memory_space<vmem>>) attributes {dimension_semantics = [#tpu.dimension_semantics<parallel>], iteration_bounds = array<i64: 1>, scalar_prefetch = 0 : i64, scratch_operands = 0 : i64, tpu.core_type = #tpu.core_type<tc>, window_params = [{transform_indices = @transform_0, window_bounds = array<i64: 16, 32>}, {pipeline_mode = #tpu.pipeline_mode<synchronous>, transform_indices = @transform_1, window_bounds = array<i64: 32, 4>}, {transform_indices = @transform_2, window_bounds = array<i64: 16, 4>}, {transform_indices = @transform_3, window_bounds = array<i64: 16, 4>}, {transform_indices = @transform_4, window_bounds = array<i64: 16, 1>}, {transform_indices = @transform_5, window_bounds = array<i64: 16, 1>}, {transform_indices = @transform_6, window_bounds = array<i64: 16, 1>}, {transform_indices = @transform_7, window_bounds = array<i64: 16, 1>}]} {
    %c0 = arith.constant 0 : index
    %c0_0 = arith.constant 0 : index
    %0 = vector.load %arg1[%c0, %c0_0] : memref<16x32xf32, #tpu.memory_space<vmem>>, vector<16x32xf32>
    %c0_1 = arith.constant 0 : index
    %c0_2 = arith.constant 0 : index
    %1 = vector.load %arg2[%c0_1, %c0_2] : memref<32x4xf32, #tpu.memory_space<vmem>>, vector<32x4xf32>
    %cst = arith.constant dense<0.000000e+00> : vector<16x4xf32>
    %2 = tpu.matmul %0, %1, %cst {dimension_numbers = #tpu.dot_dimension_numbers<[1], [0], [0], [1], [0, 0, 1, 1], [], []>} : vector<16x32xf32>, vector<32x4xf32>, vector<16x4xf32> -> vector<16x4xf32>
    %cst_3 = arith.constant dense<0xFF800000> : vector<16xf32>
    %3 = vector.multi_reduction <maximumf>, %2, %cst_3 [1] : vector<16x4xf32> to vector<16xf32>
    %4 = vector.shape_cast %3 : vector<16xf32> to vector<16x1xf32>
    %5 = vector.broadcast %4 : vector<16x1xf32> to vector<16x4xf32>
    %6 = arith.subf %2, %5 : vector<16x4xf32>
    %7 = math.exp %6 : vector<16x4xf32>
    %cst_4 = arith.constant dense<0.000000e+00> : vector<16xf32>
    %8 = vector.multi_reduction <add>, %7, %cst_4 [1] : vector<16x4xf32> to vector<16xf32>
    %9 = vector.shape_cast %8 : vector<16xf32> to vector<16x1xf32>
    %10 = vector.broadcast %9 : vector<16x1xf32> to vector<16x4xf32>
    %11 = arith.divf %7, %10 : vector<16x4xf32>
    %12 = tpu.iota {dimensions = array<i32: 1>} : vector<16x4xi32>
    %cst_5 = arith.constant dense<0xFF800000> : vector<16xf32>
    %13 = vector.multi_reduction <maximumf>, %11, %cst_5 [1] : vector<16x4xf32> to vector<16xf32>
    %14 = vector.shape_cast %13 : vector<16xf32> to vector<16x1xf32>
    %15 = vector.broadcast %14 : vector<16x1xf32> to vector<16x4xf32>
    %16 = arith.cmpf oeq, %11, %15 : vector<16x4xf32>
    %c4_i32 = arith.constant 4 : i32
    %17 = vector.broadcast %c4_i32 : i32 to vector<16x4xi32>
    %18 = arith.select %16, %12, %17 : vector<16x4xi1>, vector<16x4xi32>
    %cst_6 = arith.constant dense<2147483647> : vector<16xi32>
    %19 = vector.multi_reduction <minsi>, %18, %cst_6 [1] : vector<16x4xi32> to vector<16xi32>
    %20 = vector.shape_cast %19 : vector<16xi32> to vector<16x1xi32>
    %21 = vector.broadcast %20 : vector<16x1xi32> to vector<16x4xi32>
    %22 = arith.cmpi eq, %12, %21 : vector<16x4xi32>
    %c0_7 = arith.constant 0 : index
    %c0_8 = arith.constant 0 : index
    %23 = vector.load %arg3[%c0_7, %c0_8] : memref<16x4xf32, #tpu.memory_space<vmem>>, vector<16x4xf32>
    %24 = arith.addf %2, %23 : vector<16x4xf32>
    %cst_9 = arith.constant 0xFF800000 : f32
    %25 = vector.broadcast %cst_9 : f32 to vector<16x4xf32>
    %26 = arith.select %22, %25, %24 : vector<16x4xi1>, vector<16x4xf32>
    %cst_10 = arith.constant dense<0xFF800000> : vector<16xf32>
    %27 = vector.multi_reduction <maximumf>, %26, %cst_10 [1] : vector<16x4xf32> to vector<16xf32>
    %28 = vector.shape_cast %27 : vector<16xf32> to vector<16x1xf32>
    %29 = vector.broadcast %28 : vector<16x1xf32> to vector<16x4xf32>
    %30 = arith.cmpf oeq, %26, %29 : vector<16x4xf32>
    %c4_i32_11 = arith.constant 4 : i32
    %31 = vector.broadcast %c4_i32_11 : i32 to vector<16x4xi32>
    %32 = arith.select %30, %12, %31 : vector<16x4xi1>, vector<16x4xi32>
    %cst_12 = arith.constant dense<2147483647> : vector<16xi32>
    %33 = vector.multi_reduction <minsi>, %32, %cst_12 [1] : vector<16x4xi32> to vector<16xi32>
    %34 = vector.shape_cast %33 : vector<16xi32> to vector<16x1xi32>
    %35 = vector.broadcast %34 : vector<16x1xi32> to vector<16x4xi32>
    %36 = arith.cmpi eq, %12, %35 : vector<16x4xi32>
    %c0_13 = arith.constant 0 : index
    %c0_14 = arith.constant 0 : index
    %37 = vector.load %arg4[%c0_13, %c0_14] : memref<16x4xf32, #tpu.memory_space<vmem>>, vector<16x4xf32>
    tpu.vector_store %arg4[%c0_13, %c0_14], %11 {strides = array<i32>} : memref<16x4xf32, #tpu.memory_space<vmem>>, vector<16x4xf32>,
    %c0_15 = arith.constant 0 : index
    %c0_16 = arith.constant 0 : index
    %38 = vector.load %arg5[%c0_15, %c0_16] : memref<16x1xi32, #tpu.memory_space<vmem>>, vector<16x1xi32>
    tpu.vector_store %arg5[%c0_15, %c0_16], %20 {strides = array<i32>} : memref<16x1xi32, #tpu.memory_space<vmem>>, vector<16x1xi32>,
    %c0_17 = arith.constant 0 : index
    %c0_18 = arith.constant 0 : index
    %39 = vector.load %arg6[%c0_17, %c0_18] : memref<16x1xi32, #tpu.memory_space<vmem>>, vector<16x1xi32>
    tpu.vector_store %arg6[%c0_17, %c0_18], %34 {strides = array<i32>} : memref<16x1xi32, #tpu.memory_space<vmem>>, vector<16x1xi32>,
    %c0_19 = arith.constant 0 : index
    %c0_20 = arith.constant 0 : index
    %40 = vector.load %arg7[%c0_19, %c0_20] : memref<16x1xf32, #tpu.memory_space<vmem>>, vector<16x1xf32>
    tpu.vector_store %arg7[%c0_19, %c0_20], %14 {strides = array<i32>} : memref<16x1xf32, #tpu.memory_space<vmem>>, vector<16x1xf32>,
    %cst_21 = arith.constant 0.000000e+00 : f32
    %41 = vector.broadcast %cst_21 : f32 to vector<16x4xf32>
    %42 = arith.select %36, %11, %41 : vector<16x4xi1>, vector<16x4xf32>
    %cst_22 = arith.constant dense<0.000000e+00> : vector<16xf32>
    %43 = vector.multi_reduction <add>, %42, %cst_22 [1] : vector<16x4xf32> to vector<16xf32>
    %44 = vector.shape_cast %43 : vector<16xf32> to vector<16x1xf32>
    %c0_23 = arith.constant 0 : index
    %c0_24 = arith.constant 0 : index
    %45 = vector.load %arg8[%c0_23, %c0_24] : memref<16x1xf32, #tpu.memory_space<vmem>>, vector<16x1xf32>
    tpu.vector_store %arg8[%c0_23, %c0_24], %44 {strides = array<i32>} : memref<16x1xf32, #tpu.memory_space<vmem>>, vector<16x1xf32>,
    return
  }
  func.func @transform_0(%arg0: i32) -> (i32, i32) {
    %c0_i32 = arith.constant 0 : i32
    %c0_i32_0 = arith.constant 0 : i32
    return %arg0, %c0_i32 : i32, i32
  }
  func.func @transform_1(%arg0: i32) -> (i32, i32) {
    %c0_i32 = arith.constant 0 : i32
    %c0_i32_0 = arith.constant 0 : i32
    %c0_i32_1 = arith.constant 0 : i32
    return %c0_i32, %c0_i32_0 : i32, i32
  }
  func.func @transform_2(%arg0: i32) -> (i32, i32) {
    %c0_i32 = arith.constant 0 : i32
    %c0_i32_0 = arith.constant 0 : i32
    return %arg0, %c0_i32 : i32, i32
  }
  func.func @transform_3(%arg0: i32) -> (i32, i32) {
    %c0_i32 = arith.constant 0 : i32
    %c0_i32_0 = arith.constant 0 : i32
    return %arg0, %c0_i32 : i32, i32
  }
  func.func @transform_4(%arg0: i32) -> (i32, i32) {
    %c0_i32 = arith.constant 0 : i32
    %c0_i32_0 = arith.constant 0 : i32
    return %arg0, %c0_i32 : i32, i32
  }
  func.func @transform_5(%arg0: i32) -> (i32, i32) {
    %c0_i32 = arith.constant 0 : i32
    %c0_i32_0 = arith.constant 0 : i32
    return %arg0, %c0_i32 : i32, i32
  }
  func.func @transform_6(%arg0: i32) -> (i32, i32) {
    %c0_i32 = arith.constant 0 : i32
    %c0_i32_0 = arith.constant 0 : i32
    return %arg0, %c0_i32 : i32, i32
  }
  func.func @transform_7(%arg0: i32) -> (i32, i32) {
    %c0_i32 = arith.constant 0 : i32
    %c0_i32_0 = arith.constant 0 : i32
    return %arg0, %c0_i32 : i32, i32
  }
}

module attributes {stable_mosaic.version = 11 : i64} {
  func.func @_combine_kernel(%arg0: i32, %arg1: memref<16x1xi32, #tpu.memory_space<vmem>>, %arg2: memref<16x1xi32, #tpu.memory_space<vmem>>, %arg3: memref<16x1xf32, #tpu.memory_space<vmem>>, %arg4: memref<16x1xf32, #tpu.memory_space<vmem>>, %arg5: memref<16x32xf32, #tpu.memory_space<vmem>>) attributes {dimension_semantics = [#tpu.dimension_semantics<parallel>], iteration_bounds = array<i64: 1>, scalar_prefetch = 0 : i64, scratch_operands = 0 : i64, tpu.core_type = #tpu.core_type<tc>, window_params = [{transform_indices = @transform_0, window_bounds = array<i64: 16, 1>}, {transform_indices = @transform_1, window_bounds = array<i64: 16, 1>}, {transform_indices = @transform_2, window_bounds = array<i64: 16, 1>}, {transform_indices = @transform_3, window_bounds = array<i64: 16, 1>}, {transform_indices = @transform_4, window_bounds = array<i64: 16, 32>}]} {
    %0 = tpu.iota {dimensions = array<i32: 1>} : vector<16x32xi32>
    %c0 = arith.constant 0 : index
    %c0_0 = arith.constant 0 : index
    %1 = vector.load %arg1[%c0, %c0_0] : memref<16x1xi32, #tpu.memory_space<vmem>>, vector<16x1xi32>
    %c0_1 = arith.constant 0 : index
    %c0_2 = arith.constant 0 : index
    %2 = vector.load %arg2[%c0_1, %c0_2] : memref<16x1xi32, #tpu.memory_space<vmem>>, vector<16x1xi32>
    %c0_3 = arith.constant 0 : index
    %c0_4 = arith.constant 0 : index
    %3 = vector.load %arg3[%c0_3, %c0_4] : memref<16x1xf32, #tpu.memory_space<vmem>>, vector<16x1xf32>
    %c0_5 = arith.constant 0 : index
    %c0_6 = arith.constant 0 : index
    %4 = vector.load %arg4[%c0_5, %c0_6] : memref<16x1xf32, #tpu.memory_space<vmem>>, vector<16x1xf32>
    %5 = vector.broadcast %1 : vector<16x1xi32> to vector<16x32xi32>
    %6 = arith.cmpi eq, %0, %5 : vector<16x32xi32>
    %cst = arith.constant 0.000000e+00 : f32
    %7 = vector.shape_cast %3 : vector<16x1xf32> to vector<16x1xf32>
    %8 = vector.broadcast %7 : vector<16x1xf32> to vector<16x32xf32>
    %9 = vector.broadcast %cst : f32 to vector<16x32xf32>
    %10 = arith.select %6, %8, %9 : vector<16x32xi1>, vector<16x32xf32>
    %11 = vector.broadcast %2 : vector<16x1xi32> to vector<16x32xi32>
    %12 = arith.cmpi eq, %0, %11 : vector<16x32xi32>
    %cst_7 = arith.constant 0.000000e+00 : f32
    %13 = vector.shape_cast %4 : vector<16x1xf32> to vector<16x1xf32>
    %14 = vector.broadcast %13 : vector<16x1xf32> to vector<16x32xf32>
    %15 = vector.broadcast %cst_7 : f32 to vector<16x32xf32>
    %16 = arith.select %12, %14, %15 : vector<16x32xi1>, vector<16x32xf32>
    %17 = arith.addf %10, %16 : vector<16x32xf32>
    %c0_8 = arith.constant 0 : index
    %c0_9 = arith.constant 0 : index
    %18 = vector.load %arg5[%c0_8, %c0_9] : memref<16x32xf32, #tpu.memory_space<vmem>>, vector<16x32xf32>
    tpu.vector_store %arg5[%c0_8, %c0_9], %17 {strides = array<i32>} : memref<16x32xf32, #tpu.memory_space<vmem>>, vector<16x32xf32>,
    return
  }
  func.func @transform_0(%arg0: i32) -> (i32, i32) {
    %c0_i32 = arith.constant 0 : i32
    %c0_i32_0 = arith.constant 0 : i32
    return %arg0, %c0_i32 : i32, i32
  }
  func.func @transform_1(%arg0: i32) -> (i32, i32) {
    %c0_i32 = arith.constant 0 : i32
    %c0_i32_0 = arith.constant 0 : i32
    return %arg0, %c0_i32 : i32, i32
  }
  func.func @transform_2(%arg0: i32) -> (i32, i32) {
    %c0_i32 = arith.constant 0 : i32
    %c0_i32_0 = arith.constant 0 : i32
    return %arg0, %c0_i32 : i32, i32
  }
  func.func @transform_3(%arg0: i32) -> (i32, i32) {
    %c0_i32 = arith.constant 0 : i32
    %c0_i32_0 = arith.constant 0 : i32
    return %arg0, %c0_i32 : i32, i32
  }
  func.func @transform_4(%arg0: i32) -> (i32, i32) {
    %c0_i32 = arith.constant 0 : i32
    %c0_i32_0 = arith.constant 0 : i32
    return %arg0, %c0_i32 : i32, i32
  }
}

</mosaic_0001>

<llo_original>
// kernel: top2gate.3
$region0: #{top2gate.3}
  #allocation0 [shape = 'u32[]', space=smem, size = 0x4, offset = 0x4, fixed_abs, tag = 'smem constant byte address 0x4 - core index']
  #allocation1 [shape = 'u32[72,128]{1,0:T(1,128)}', space=vmem, size = 0x9000, scoped, tag = 'internal scratch']
  %s0 = inlined_call_operand.vmem [shape: f32[16,32], index: 0, kind: input, shape index: {}]
  %s1 = inlined_call_operand.vmem [shape: f32[32,4], index: 1, kind: input, shape index: {}]
  %s2 = inlined_call_operand.vmem [shape: f32[16,4], index: 2, kind: input, shape index: {}]
  %s3 = inlined_call_operand.vmem [shape: f32[16,4], index: 3, kind: output, shape index: {0}]
  %s4 = inlined_call_operand.vmem [shape: s32[16,1], index: 4, kind: output, shape index: {1}]
  %s5 = inlined_call_operand.vmem [shape: s32[16,1], index: 5, kind: output, shape index: {2}]
  %s6 = inlined_call_operand.vmem [shape: f32[16,1], index: 6, kind: output, shape index: {3}]
  %s7 = inlined_call_operand.vmem [shape: f32[16,1], index: 7, kind: output, shape index: {4}]
  %8 = xla_tuple %s3, %s4, %s5, %s6, %s7
  %s9 = sld [smem:[#allocation0]]
  $region54: #{top2gate.3} parent=0
    _
  %s11 = ssub.s32 1, %s9
  %s12 = scalar_select 0, %s11, %s9
  // Predicated region
  $region2: #{top2gate.3} parent=0 // pred_check
    _
  $region3: #{top2gate.3} parent=0 // pred_check_branch
    %14 = sbr.rel (0) target = $region5
  $region4: #{top2gate.3} parent=0 // pred_region
    _
  $region5: #{top2gate.3} parent=0 // pred_fallthru
    _
  // Predicated region
  $region6: #{top2gate.3} parent=0 // pred_check
    _
  $region7: #{top2gate.3} parent=0 // pred_check_branch
    %16 = sbr.rel (0) target = $region9
  $region8: #{top2gate.3} parent=0 // pred_region
    _
  $region9: #{top2gate.3} parent=0 // pred_fallthru
    _
  // Predicated region
  $region10: #{top2gate.3} parent=0 // pred_check
    _
  $region11: #{top2gate.3} parent=0 // pred_check_branch
    %18 = sbr.rel (0) target = $region13
  $region12: #{top2gate.3} parent=0 // pred_region
    _
  $region13: #{top2gate.3} parent=0 // pred_fallthru
    _
  %v19 = vld [vmem:[%s0] sm:$0xff]
  %v20 = vld [vmem:[%s0 + $0x8] sm:$0xff]
  %v21 = vld [vmem:[%s1] sm:$0xff]
  %v22 = vld [vmem:[%s1 + $0x8] sm:$0xff]
  %v23 = vld [vmem:[%s1 + $0x10] sm:$0xff]
  %v24 = vld [vmem:[%s1 + $0x18] sm:$0xff]
  %vm25 = vcmask 261120
  %v27 = vsel %vm25, %v19, 0
  %v30 = vsel %vm25, %v20, 0
  %32 = vmatpush.msra.mxu0 0.0
  %33 = vmatpush.msra.mxu0 0.0
  %34 = vmatpush.msra.mxu0 0.0
  %35 = vmatpush.msra.mxu0 0.0
  %36 = vmatpush.msra.mxu0 0.0
  %37 = vmatpush.msra.mxu0 0.0
  %38 = vmatpush.msra.mxu0 0.0
  %39 = vmatpush.msra.mxu0 0.0
  %40 = vmatpush.msra.mxu0 0.0
  %41 = vmatpush.msra.mxu0 0.0
  %42 = vmatpush.msra.mxu0 0.0
  %43 = vmatpush.msra.mxu0 0.0
  %44 = vmatpush.msra.mxu0 %v24
  %45 = vmatpush.msra.mxu0 %v23
  %46 = vmatpush.msra.mxu0 %v22
  %47 = vmatpush.msra.mxu0 %v21
  %48 = vmatmul.f32.gmra.mxu0 %v27
  %v49 = vpop.f32.mrf.mxu0
  %v50 = vadd.f32 0.0, %v49
  %51 = vmatmul.f32.gmra.mxu0 %v30
  %v52 = vpop.f32.mrf.mxu0
  %v53 = vadd.f32 0.0, %v52
  %54 = vdwg.mxu0
  %vm55 = vcmask 31744
  %v56 = vsel %vm55, %v50, -inf
  %57 = vmax.xlane.f32.xlu0 %v56
  %v58 = vpop.xlane.xlu0 %57
  %v59 = vsel %vm55, %v53, -inf
  %60 = vmax.xlane.f32.xlu0 %v59
  %v61 = vpop.xlane.xlu0 %60
  %v62 = vsub.f32 %v50, %v58
  %v63 = vsub.f32 %v53, %v61
  %v64 = vmul.f32 %v62, 1.442695
  %v65 = vpow.pop %v64
  %v66 = vmul.f32 %v63, 1.442695
  %v67 = vpow.pop %v66
  %v68 = vsel %vm55, %v65, 0.0
  %69 = vadd.xlane.f32.xlu0 %v68
  %v70 = vpop.xlane.xlu0 %69
  %v71 = vsel %vm55, %v67, 0.0
  %72 = vadd.xlane.f32.xlu0 %v71
  %v73 = vpop.xlane.xlu0 %72
  %v74 = vrcp.pop %v70
  %v75 = vmul.f32 %v70, %v74
  %v76 = vsub.f32 1.0, %v75
  %v77 = vmul.f32 %v74, %v76
  %v78 = vadd.f32 %v74, %v77
  %vm79 = vweird.f32 %v70
  %vm80 = vweird.f32 %v74
  %vm81 = vmor %vm79, %vm80
  %v82 = vsel %vm81, %v74, %v78
  %v83 = vand.u32 2147483647, %v70
  %vm84 = vcmp.eq.f32.partialorder %v83, 8.507059e+37
  %v85 = vand.u32 %v70, 2147483648
  %v86 = vor.u32 1.1754944e-38, %v85
  %v87 = vsel %vm84, %v86, %v82
  %v88 = vmul.f32 %v65, %v87
  %v89 = vrcp.pop %v73
  %v90 = vmul.f32 %v73, %v89
  %v91 = vsub.f32 1.0, %v90
  %v92 = vmul.f32 %v89, %v91
  %v93 = vadd.f32 %v89, %v92
  %vm94 = vweird.f32 %v73
  %vm95 = vweird.f32 %v89
  %vm96 = vmor %vm94, %vm95
  %v97 = vsel %vm96, %v89, %v93
  %v98 = vand.u32 2147483647, %v73
  %vm99 = vcmp.eq.f32.partialorder %v98, 8.507059e+37
  %v100 = vand.u32 %v73, 2147483648
  %v101 = vor.u32 1.1754944e-38, %v100
  %v102 = vsel %vm99, %v101, %v97
  %v103 = vmul.f32 %v67, %v102
  %v104 = vlaneseq
  %v105 = vand.u32 %v104, 127
  %v106 = vsel %vm55, %v88, -inf
  %107 = vmax.xlane.f32.xlu0 %v106
  %v108 = vpop.xlane.xlu0 %107
  %v109 = vsel %vm55, %v103, -inf
  %110 = vmax.xlane.f32.xlu0 %v109
  %v111 = vpop.xlane.xlu0 %110
  %vm112 = vcmp.eq.f32.partialorder %v88, %v108
  %vm113 = vcmp.eq.f32.partialorder %v103, %v111
  %v114 = vsel %vm112, %v105, 4
  %v115 = vsel %vm113, %v105, 4
  %v116 = vsel %vm55, %v114, 2147483647
  %v117 = vand.u32 %v116, 65535
  %v118 = vshra.s32 %v116, 16
  %v119 = vcvt.s32.f32 %v117
  %v120 = vcvt.s32.f32 %v118
  %121 = vmin.xlane.f32.xlu0 %v120
  %v122 = vpop.xlane.xlu0 %121
  %vm123 = vcmp.eq.f32.partialorder %v120, %v122
  %v124 = vsel %vm123, %v119, inf
  %125 = vmin.xlane.f32.xlu0 %v124
  %v126 = vpop.xlane.xlu0 %125
  %v127 = vcvt.f32.s32 %v126
  %v128 = vcvt.f32.s32 %v122
  %v129 = vshll.u32 %v128, 16
  %v130 = vadd.s32 %v129, %v127
  %v131 = vsel %vm55, %v115, 2147483647
  %v132 = vand.u32 %v131, 65535
  %v133 = vshra.s32 %v131, 16
  %v134 = vcvt.s32.f32 %v132
  %v135 = vcvt.s32.f32 %v133
  %136 = vmin.xlane.f32.xlu0 %v135
  %v137 = vpop.xlane.xlu0 %136
  %vm138 = vcmp.eq.f32.partialorder %v135, %v137
  %v139 = vsel %vm138, %v134, inf
  %140 = vmin.xlane.f32.xlu0 %v139
  %v141 = vpop.xlane.xlu0 %140
  %v142 = vcvt.f32.s32 %v141
  %v143 = vcvt.f32.s32 %v137
  %v144 = vshll.u32 %v143, 16
  %v145 = vadd.s32 %v144, %v142
  %vm146 = vcmp.eq.s32.totalorder %v105, %v130
  %vm147 = vcmp.eq.s32.totalorder %v105, %v145
  %v148 = vld [vmem:[%s2] sm:$0xff]
  %v149 = vld [vmem:[%s2 + $0x8] sm:$0xff]
  %v150 = vadd.f32 %v50, %v148
  %v151 = vadd.f32 %v53, %v149
  %v152 = vsel %vm146, -inf, %v150
  %v153 = vsel %vm147, -inf, %v151
  %v154 = vsel %vm55, %v152, -inf
  %155 = vmax.xlane.f32.xlu0 %v154
  %v156 = vpop.xlane.xlu0 %155
  %v157 = vsel %vm55, %v153, -inf
  %158 = vmax.xlane.f32.xlu0 %v157
  %v159 = vpop.xlane.xlu0 %158
  %vm160 = vcmp.eq.f32.partialorder %v152, %v156
  %vm161 = vcmp.eq.f32.partialorder %v153, %v159
  %v162 = vsel %vm160, %v105, 4
  %v163 = vsel %vm161, %v105, 4
  %v164 = vsel %vm55, %v162, 2147483647
  %v165 = vand.u32 %v164, 65535
  %v166 = vshra.s32 %v164, 16
  %v167 = vcvt.s32.f32 %v165
  %v168 = vcvt.s32.f32 %v166
  %169 = vmin.xlane.f32.xlu0 %v168
  %v170 = vpop.xlane.xlu0 %169
  %vm171 = vcmp.eq.f32.partialorder %v168, %v170
  %v172 = vsel %vm171, %v167, inf
  %173 = vmin.xlane.f32.xlu0 %v172
  %v174 = vpop.xlane.xlu0 %173
  %v175 = vcvt.f32.s32 %v174
  %v176 = vcvt.f32.s32 %v170
  %v177 = vshll.u32 %v176, 16
  %v178 = vadd.s32 %v177, %v175
  %v179 = vsel %vm55, %v163, 2147483647
  %v180 = vand.u32 %v179, 65535
  %v181 = vshra.s32 %v179, 16
  %v182 = vcvt.s32.f32 %v180
  %v183 = vcvt.s32.f32 %v181
  %184 = vmin.xlane.f32.xlu0 %v183
  %v185 = vpop.xlane.xlu0 %184
  %vm186 = vcmp.eq.f32.partialorder %v183, %v185
  %v187 = vsel %vm186, %v182, inf
  %188 = vmin.xlane.f32.xlu0 %v187
  %v189 = vpop.xlane.xlu0 %188
  %v190 = vcvt.f32.s32 %v189
  %v191 = vcvt.f32.s32 %v185
  %v192 = vshll.u32 %v191, 16
  %v193 = vadd.s32 %v192, %v190
  %vm194 = vcmp.eq.s32.totalorder %v105, %v178
  %vm195 = vcmp.eq.s32.totalorder %v105, %v193
  %196 = vst.msk [vmem:[%s3] sm:$0xff] %vm55, %v88
  %197 = vst.msk [vmem:[%s3 + $0x8] sm:$0xff] %vm55, %v103
  %vm198 = vcmask 7168
  %199 = vst.msk [vmem:[%s4] sm:$0xff] %vm198, %v130
  %200 = vst.msk [vmem:[%s4 + $0x8] sm:$0xff] %vm198, %v145
  %201 = vst.msk [vmem:[%s5] sm:$0xff] %vm198, %v178
  %202 = vst.msk [vmem:[%s5 + $0x8] sm:$0xff] %vm198, %v193
  %203 = vst.msk [vmem:[%s6] sm:$0xff] %vm198, %v108
  %204 = vst.msk [vmem:[%s6 + $0x8] sm:$0xff] %vm198, %v111
  %v205 = vsel %vm194, %v88, 0.0
  %v206 = vsel %vm195, %v103, 0.0
  %v207 = vsel %vm55, %v205, 0.0
  %208 = vadd.xlane.f32.xlu0 %v207
  %v209 = vpop.xlane.xlu0 %208
  %v210 = vsel %vm55, %v206, 0.0
  %211 = vadd.xlane.f32.xlu0 %v210
  %v212 = vpop.xlane.xlu0 %211
  %213 = vst.msk [vmem:[%s7] sm:$0xff] %vm198, %v209
  %214 = vst.msk [vmem:[%s7 + $0x8] sm:$0xff] %vm198, %v212
  // Predicated region
  $region14: #{top2gate.3} parent=0 // pred_check
    _
  $region15: #{top2gate.3} parent=0 // pred_check_branch
    %216 = sbr.rel (0) target = $region17
  $region16: #{top2gate.3} parent=0 // pred_region
    _
  $region17: #{top2gate.3} parent=0 // pred_fallthru
    _
  // Predicated region
  $region18: #{top2gate.3} parent=0 // pred_check
    _
  $region19: #{top2gate.3} parent=0 // pred_check_branch
    %218 = sbr.rel (0) target = $region21
  $region20: #{top2gate.3} parent=0 // pred_region
    _
  $region21: #{top2gate.3} parent=0 // pred_fallthru
    _
  // Predicated region
  $region22: #{top2gate.3} parent=0 // pred_check
    _
  $region23: #{top2gate.3} parent=0 // pred_check_branch
    %220 = sbr.rel (0) target = $region25
  $region24: #{top2gate.3} parent=0 // pred_region
    _
  $region25: #{top2gate.3} parent=0 // pred_fallthru
    _
  // Predicated region
  $region26: #{top2gate.3} parent=0 // pred_check
    _
  $region27: #{top2gate.3} parent=0 // pred_check_branch
    %222 = sbr.rel (0) target = $region29
  $region28: #{top2gate.3} parent=0 // pred_region
    _
  $region29: #{top2gate.3} parent=0 // pred_fallthru
    _
  // Predicated region
  $region30: #{top2gate.3} parent=0 // pred_check
    _
  $region31: #{top2gate.3} parent=0 // pred_check_branch
    %224 = sbr.rel (0) target = $region33
  $region32: #{top2gate.3} parent=0 // pred_region
    _
  $region33: #{top2gate.3} parent=0 // pred_fallthru
    _
  // Predicated region
  $region34: #{top2gate.3} parent=0 // pred_check
    _
  $region35: #{top2gate.3} parent=0 // pred_check_branch
    %226 = sbr.rel (0) target = $region37
  $region36: #{top2gate.3} parent=0 // pred_region
    _
  $region37: #{top2gate.3} parent=0 // pred_fallthru
    _
  // Predicated region
  $region38: #{top2gate.3} parent=0 // pred_check
    _
  $region39: #{top2gate.3} parent=0 // pred_check_branch
    %228 = sbr.rel (0) target = $region41
  $region40: #{top2gate.3} parent=0 // pred_region
    _
  $region41: #{top2gate.3} parent=0 // pred_fallthru
    _
  // Predicated region
  $region42: #{top2gate.3} parent=0 // pred_check
    _
  $region43: #{top2gate.3} parent=0 // pred_check_branch
    %230 = sbr.rel (0) target = $region45
  $region44: #{top2gate.3} parent=0 // pred_region
    _
  $region45: #{top2gate.3} parent=0 // pred_fallthru
    _
  // Predicated region
  $region46: #{top2gate.3} parent=0 // pred_check
    _
  $region47: #{top2gate.3} parent=0 // pred_check_branch
    %232 = sbr.rel (0) target = $region49
  $region48: #{top2gate.3} parent=0 // pred_region
    _
  $region49: #{top2gate.3} parent=0 // pred_fallthru
    _
  // Predicated region
  $region50: #{top2gate.3} parent=0 // pred_check
    _
  $region51: #{top2gate.3} parent=0 // pred_check_branch
    %234 = sbr.rel (0) target = $region53
  $region52: #{top2gate.3} parent=0 // pred_region
    _
  $region53: #{top2gate.3} parent=0 // pred_fallthru
    _

// kernel: top2gate.4
$region0: #{top2gate.4}
  #allocation0 [shape = 'u32[]', space=smem, size = 0x4, offset = 0x4, fixed_abs, tag = 'smem constant byte address 0x4 - core index']
  #allocation1 [shape = 'u32[72,128]{1,0:T(1,128)}', space=vmem, size = 0x9000, scoped, tag = 'internal scratch']
  #allocation2 [shape = 'f32[1,4]{1,0:T(1,128)}', space=vmem, size = 0x200, scoped, tag = 'scratch operand']
  #allocation3 [shape = 'f32[1,4]{1,0:T(1,128)}', space=vmem, size = 0x200, scoped, tag = 'scratch operand']
  #allocation4 [shape = 'bf16[16,16]{1,0:T(8,128)(2,1)}', space=vmem, size = 0x1000, scoped, tag = 'scratch operand']
  %s0 = inlined_call_operand.vmem [shape: s32[16,1], index: 0, kind: input, shape index: {}]
  %s1 = inlined_call_operand.vmem [shape: s32[16,1], index: 1, kind: input, shape index: {}]
  %s2 = inlined_call_operand.vmem [shape: f32[16,1], index: 2, kind: input, shape index: {}]
  %s3 = inlined_call_operand.vmem [shape: f32[16,1], index: 3, kind: input, shape index: {}]
  %s4 = inlined_call_operand.vmem [shape: f32[1,4], index: 4, kind: input, shape index: {}]
  %s5 = inlined_call_operand.vmem [shape: s32[16,1], index: 5, kind: output, shape index: {0}]
  %s6 = inlined_call_operand.vmem [shape: s32[16,1], index: 6, kind: output, shape index: {1}]
  %s7 = inlined_call_operand.vmem [shape: f32[16,1], index: 7, kind: output, shape index: {2}]
  %s8 = inlined_call_operand.vmem [shape: f32[16,1], index: 8, kind: output, shape index: {3}]
  %9 = xla_tuple %s5, %s6, %s7, %s8
  %s10 = sld [smem:[#allocation0]]
  $region58: #{top2gate.4} parent=0
    _
  %s12 = ssub.s32 1, %s10
  %s13 = scalar_select 0, %s12, %s10
  // Predicated region
  $region2: #{top2gate.4} parent=0 // pred_check
    _
  $region3: #{top2gate.4} parent=0 // pred_check_branch
    %15 = sbr.rel (0) target = $region5
  $region4: #{top2gate.4} parent=0 // pred_region
    _
  $region5: #{top2gate.4} parent=0 // pred_fallthru
    _
  // Predicated region
  $region6: #{top2gate.4} parent=0 // pred_check
    _
  $region7: #{top2gate.4} parent=0 // pred_check_branch
    %17 = sbr.rel (0) target = $region9
  $region8: #{top2gate.4} parent=0 // pred_region
    _
  $region9: #{top2gate.4} parent=0 // pred_fallthru
    _
  // Predicated region
  $region10: #{top2gate.4} parent=0 // pred_check
    _
  $region11: #{top2gate.4} parent=0 // pred_check_branch
    %19 = sbr.rel (0) target = $region13
  $region12: #{top2gate.4} parent=0 // pred_region
    _
  $region13: #{top2gate.4} parent=0 // pred_fallthru
    _
  // Predicated region
  $region14: #{top2gate.4} parent=0 // pred_check
    _
  $region15: #{top2gate.4} parent=0 // pred_check_branch
    %21 = sbr.rel (0) target = $region17
  $region16: #{top2gate.4} parent=0 // pred_region
    _
  $region17: #{top2gate.4} parent=0 // pred_fallthru
    _
  // Predicated region
  $region18: #{top2gate.4} parent=0 // pred_check
    _
  $region19: #{top2gate.4} parent=0 // pred_check_branch
    %23 = sbr.rel (0) target = $region21
  $region20: #{top2gate.4} parent=0 // pred_region
    _
  $region21: #{top2gate.4} parent=0 // pred_fallthru
    _
  %p25 = scmp.eq.s32.totalorder 0, 0
  // Predicated region
  $region22: #{top2gate.4} parent=0 // pred_check
    %p26 = pneg %p25
  $region23: #{top2gate.4} parent=0 // pred_check_branch
    %28 = sbr.rel (%p26) target = $region25
  $region24: #{top2gate.4} parent=0 // pred_region
    %vm29 = vcmask 24576
    %30 = vst.msk [vmem:[#allocation2] sm:$0x1] %vm29, 0.0
    %31 = vst.msk [vmem:[#allocation3] sm:$0x1] %vm29, 0.0
    %v32 = vlaneseq
    %v33 = vshrl.u32 %v32, 7
    %v34 = vadd.s32 %v33, 8
    %v35 = vlaneseq
    %v36 = vand.u32 %v35, 127
    %vm37 = vcmp.ge.s32.totalorder %v33, %v36
    %vm38 = vcmp.ge.s32.totalorder %v34, %v36
    %v39 = vsel %vm37, 1, 0
    %v40 = vsel %vm38, 1, 0
    %v41 = vcvt.s32.f32 %v39
    %v42 = vcvt.s32.f32 %v40
    %v43 = vpack.c.bf16 %v41, %v41
    %v44 = vpack.c.bf16 %v42, %v42
    %vm45 = vcmask 125952
    %46 = vst.msk [vmem:[#allocation4] sm:$0xf] %vm45, %v43
    %47 = vst.msk [vmem:[#allocation4 + $0x4] sm:$0xf] %vm45, %v44
  $region25: #{top2gate.4} parent=0 // pred_fallthru
    _
  %v48 = vld [vmem:[%s0] sm:$0xff]
  %v49 = vld [vmem:[%s0 + $0x8] sm:$0xff]
  %v50 = vld [vmem:[%s1] sm:$0xff]
  %v51 = vld [vmem:[%s1 + $0x8] sm:$0xff]
  %v52 = vld [vmem:[%s2] sm:$0xff]
  %v53 = vld [vmem:[%s2 + $0x8] sm:$0xff]
  %v54 = vld [vmem:[%s3] sm:$0xff]
  %v55 = vld [vmem:[%s3 + $0x8] sm:$0xff]
  %v56 = vlaneseq
  %v57 = vand.u32 %v56, 127
  %58 = vset.pattern.permute.xlu0 0
  %59 = vperm.xlu0 %58, %v48
  %v60 = vpop.permute.xlu0 %59
  %61 = vset.pattern.permute.xlu0 0
  %62 = vperm.xlu0 %61, %v49
  %v63 = vpop.permute.xlu0 %62
  %vm64 = vcmp.eq.s32.totalorder %v57, %v60
  %vm65 = vcmp.eq.s32.totalorder %v57, %v63
  %66 = vset.pattern.permute.xlu0 0
  %67 = vperm.xlu0 %66, %v50
  %v68 = vpop.permute.xlu0 %67
  %69 = vset.pattern.permute.xlu0 0
  %70 = vperm.xlu0 %69, %v51
  %v71 = vpop.permute.xlu0 %70
  %vm72 = vcmp.eq.s32.totalorder %v57, %v68
  %vm73 = vcmp.eq.s32.totalorder %v57, %v71
  %v74 = vsel %vm64, 1, 0
  %v75 = vsel %vm65, 1, 0
  %v76 = vcvt.s32.f32 %v74
  %v77 = vcvt.s32.f32 %v75
  %v78 = vpack.c.bf16 %v77, %v76
  %v79 = vsel %vm72, 1, 0
  %v80 = vsel %vm73, 1, 0
  %v81 = vcvt.s32.f32 %v79
  %v82 = vcvt.s32.f32 %v80
  %v83 = vpack.c.bf16 %v82, %v81
  %v84 = vld [vmem:[#allocation4] sm:$0xf]
  %v85 = vld [vmem:[#allocation4 + $0x4] sm:$0xf]
  %v88 = vunpack.c.l.b16 %v84
  %v89 = vunpack.c.l.b16 %v85
  %v90 = vpack.c.b16 %v89, %v88
  %vm91 = vcmask 130048
  %v93 = vsel %vm91, %v90, 0
  %95 = vmatpush.bf16.msra.mxu0 0
  %96 = vmatpush.bf16.msra.mxu0 0
  %97 = vmatpush.bf16.msra.mxu0 0
  %98 = vmatpush.bf16.msra.mxu0 0
  %99 = vmatpush.bf16.msra.mxu0 0
  %100 = vmatpush.bf16.msra.mxu0 0
  %101 = vmatpush.bf16.msra.mxu0 0
  %102 = vmatpush.bf16.msra.mxu0 %v78
  %103 = vmatmul.bf16.gmra.mxu0 %v93
  %v104 = vpop.f32.mrf.mxu0
  %v105 = vadd.f32 0.0, %v104
  %v106 = vpop.f32.mrf.mxu0
  %v107 = vadd.f32 0.0, %v106
  %108 = vdwg.mxu0
  %109 = vmatpush.bf16.msra.mxu0 0
  %110 = vmatpush.bf16.msra.mxu0 0
  %111 = vmatpush.bf16.msra.mxu0 0
  %112 = vmatpush.bf16.msra.mxu0 0
  %113 = vmatpush.bf16.msra.mxu0 0
  %114 = vmatpush.bf16.msra.mxu0 0
  %115 = vmatpush.bf16.msra.mxu0 0
  %116 = vmatpush.bf16.msra.mxu0 %v83
  %117 = vmatmul.bf16.gmra.mxu0 %v93
  %v118 = vpop.f32.mrf.mxu0
  %v119 = vadd.f32 0.0, %v118
  %v120 = vpop.f32.mrf.mxu0
  %v121 = vadd.f32 0.0, %v120
  %122 = vdwg.mxu0
  %v123 = vsub.f32 %v105, 1.0
  %v124 = vsub.f32 %v107, 1.0
  %v125 = vld [vmem:[#allocation2] sm:$0x1]
  %v127 = vperm.slane %v125, 0
  %v129 = vadd.f32 %v123, %v127
  %v130 = vadd.f32 %v124, %v127
  %v131 = vsub.f32 %v119, 1.0
  %v132 = vsub.f32 %v121, 1.0
  %v133 = vld [vmem:[#allocation3] sm:$0x1]
  %v135 = vperm.slane %v133, 0
  %v137 = vadd.f32 %v131, %v135
  %v138 = vadd.f32 %v132, %v135
  %v139 = vld [vmem:[%s4] sm:$0x1]
  %v141 = vperm.slane %v139, 0
  %v143 = vadd.f32 %v137, %v141
  %v144 = vadd.f32 %v138, %v141
  %vm145 = vcmask 31744
  %v146 = vsel %vm145, %v76, 0.0
  %v147 = vsel %vm145, %v77, 0.0
  %v148 = vadd.f32 %v146, %v147
  %v149 = vrot.slane %v148, 4
  %v150 = vadd.f32 %v148, %v149
  %v151 = vrot.slane %v150, 2
  %v152 = vadd.f32 %v150, %v151
  %v153 = vrot.slane %v152, 1
  %v154 = vadd.f32 %v152, %v153
  %v155 = vadd.f32 %v125, %v154
  %vm156 = vcmask 24576
  %157 = vst.msk [vmem:[#allocation2] sm:$0x1] %vm156, %v155
  %v158 = vld [vmem:[#allocation3] sm:$0x1]
  %v159 = vsel %vm145, %v81, 0.0
  %v160 = vsel %vm145, %v82, 0.0
  %v161 = vadd.f32 %v159, %v160
  %v162 = vrot.slane %v161, 4
  %v163 = vadd.f32 %v161, %v162
  %v164 = vrot.slane %v163, 2
  %v165 = vadd.f32 %v163, %v164
  %v166 = vrot.slane %v165, 1
  %v167 = vadd.f32 %v165, %v166
  %v168 = vadd.f32 %v158, %v167
  %169 = vst.msk [vmem:[#allocation3] sm:$0x1] %vm156, %v168
  %vm170 = vcmp.lt.f32.partialorder %v129, 8.0
  %vm171 = vcmp.lt.f32.partialorder %v130, 8.0
  %v172 = vsel %vm170, 1, 0
  %v173 = vsel %vm171, 1, 0
  %v174 = vcvt.s32.f32 %v172
  %v175 = vcvt.s32.f32 %v173
  %v176 = vmul.f32 %v76, %v174
  %v177 = vmul.f32 %v77, %v175
  %vm178 = vcmp.lt.f32.partialorder %v143, 8.0
  %vm179 = vcmp.lt.f32.partialorder %v144, 8.0
  %v180 = vsel %vm178, 1, 0
  %v181 = vsel %vm179, 1, 0
  %v182 = vcvt.s32.f32 %v180
  %v183 = vcvt.s32.f32 %v181
  %v184 = vmul.f32 %v81, %v182
  %v185 = vmul.f32 %v82, %v183
  %v186 = vmul.f32 %v129, %v176
  %v187 = vmul.f32 %v130, %v177
  %v188 = vsel %vm145, %v186, 0.0
  %189 = vadd.xlane.f32.xlu0 %v188
  %v190 = vpop.xlane.xlu0 %189
  %v191 = vsel %vm145, %v187, 0.0
  %192 = vadd.xlane.f32.xlu0 %v191
  %v193 = vpop.xlane.xlu0 %192
  %v194 = vmul.f32 %v143, %v184
  %v195 = vmul.f32 %v144, %v185
  %v196 = vsel %vm145, %v194, 0.0
  %197 = vadd.xlane.f32.xlu0 %v196
  %v198 = vpop.xlane.xlu0 %197
  %v199 = vsel %vm145, %v195, 0.0
  %200 = vadd.xlane.f32.xlu0 %v199
  %v201 = vpop.xlane.xlu0 %200
  %v202 = vsel %vm145, %v176, 0.0
  %203 = vadd.xlane.f32.xlu0 %v202
  %v204 = vpop.xlane.xlu0 %203
  %v205 = vsel %vm145, %v177, 0.0
  %206 = vadd.xlane.f32.xlu0 %v205
  %v207 = vpop.xlane.xlu0 %206
  %v208 = vsel %vm145, %v184, 0.0
  %209 = vadd.xlane.f32.xlu0 %v208
  %v210 = vpop.xlane.xlu0 %209
  %v211 = vsel %vm145, %v185, 0.0
  %212 = vadd.xlane.f32.xlu0 %v211
  %v213 = vpop.xlane.xlu0 %212
  %v214 = vmul.f32 %v52, %v204
  %v215 = vmul.f32 %v53, %v207
  %v216 = vmul.f32 %v54, %v210
  %v217 = vmul.f32 %v55, %v213
  %v218 = vadd.f32 %v214, %v216
  %v219 = vadd.f32 %v215, %v217
  %v220 = vmax.f32 %v218, 1.1920929e-07
  %v221 = vmax.f32 %v219, 1.1920929e-07
  %v222 = vrcp.pop %v220
  %v223 = vmul.f32 %v220, %v222
  %v224 = vsub.f32 1.0, %v223
  %v225 = vmul.f32 %v222, %v224
  %v226 = vadd.f32 %v222, %v225
  %vm227 = vweird.f32 %v220
  %vm228 = vweird.f32 %v222
  %vm229 = vmor %vm227, %vm228
  %v230 = vsel %vm229, %v222, %v226
  %v231 = vand.u32 2147483647, %v220
  %vm232 = vcmp.eq.f32.partialorder %v231, 8.507059e+37
  %v233 = vand.u32 %v220, 2147483648
  %v234 = vor.u32 1.1754944e-38, %v233
  %v235 = vsel %vm232, %v234, %v230
  %v236 = vmul.f32 %v214, %v235
  %v237 = vrcp.pop %v221
  %v238 = vmul.f32 %v221, %v237
  %v239 = vsub.f32 1.0, %v238
  %v240 = vmul.f32 %v237, %v239
  %v241 = vadd.f32 %v237, %v240
  %vm242 = vweird.f32 %v221
  %vm243 = vweird.f32 %v237
  %vm244 = vmor %vm242, %vm243
  %v245 = vsel %vm244, %v237, %v241
  %v246 = vand.u32 2147483647, %v221
  %vm247 = vcmp.eq.f32.partialorder %v246, 8.507059e+37
  %v248 = vand.u32 %v221, 2147483648
  %v249 = vor.u32 1.1754944e-38, %v248
  %v250 = vsel %vm247, %v249, %v245
  %v251 = vmul.f32 %v215, %v250
  %vm252 = vcmask 7168
  %253 = vst.msk [vmem:[%s7] sm:$0xff] %vm252, %v236
  %254 = vst.msk [vmem:[%s7 + $0x8] sm:$0xff] %vm252, %v251
  %v255 = vmul.f32 %v216, %v235
  %v256 = vmul.f32 %v217, %v250
  %257 = vst.msk [vmem:[%s8] sm:$0xff] %vm252, %v255
  %258 = vst.msk [vmem:[%s8 + $0x8] sm:$0xff] %vm252, %v256
  %v259 = vmul.u32 %v48, 8
  %v260 = vmul.u32 %v49, 8
  %v261 = vcvt.f32.s32.to.zero.pseudo %v190
  %v262 = vcvt.f32.s32.to.zero.pseudo %v193
  %v263 = vadd.s32 %v259, %v261
  %v264 = vadd.s32 %v260, %v262
  %265 = vst.msk [vmem:[%s5] sm:$0xff] %vm252, %v263
  %266 = vst.msk [vmem:[%s5 + $0x8] sm:$0xff] %vm252, %v264
  %v267 = vmul.u32 %v50, 8
  %v268 = vmul.u32 %v51, 8
  %v269 = vcvt.f32.s32.to.zero.pseudo %v198
  %v270 = vcvt.f32.s32.to.zero.pseudo %v201
  %v271 = vadd.s32 %v267, %v269
  %v272 = vadd.s32 %v268, %v270
  %273 = vst.msk [vmem:[%s6] sm:$0xff] %vm252, %v271
  %274 = vst.msk [vmem:[%s6 + $0x8] sm:$0xff] %vm252, %v272
  // Predicated region
  $region26: #{top2gate.4} parent=0 // pred_check
    _
  $region27: #{top2gate.4} parent=0 // pred_check_branch
    %276 = sbr.rel (0) target = $region29
  $region28: #{top2gate.4} parent=0 // pred_region
    _
  $region29: #{top2gate.4} parent=0 // pred_fallthru
    _
  // Predicated region
  $region30: #{top2gate.4} parent=0 // pred_check
    _
  $region31: #{top2gate.4} parent=0 // pred_check_branch
    %278 = sbr.rel (0) target = $region33
  $region32: #{top2gate.4} parent=0 // pred_region
    _
  $region33: #{top2gate.4} parent=0 // pred_fallthru
    _
  // Predicated region
  $region34: #{top2gate.4} parent=0 // pred_check
    _
  $region35: #{top2gate.4} parent=0 // pred_check_branch
    %280 = sbr.rel (0) target = $region37
  $region36: #{top2gate.4} parent=0 // pred_region
    _
  $region37: #{top2gate.4} parent=0 // pred_fallthru
    _
  // Predicated region
  $region38: #{top2gate.4} parent=0 // pred_check
    _
  $region39: #{top2gate.4} parent=0 // pred_check_branch
    %282 = sbr.rel (0) target = $region41
  $region40: #{top2gate.4} parent=0 // pred_region
    _
  $region41: #{top2gate.4} parent=0 // pred_fallthru
    _
  // Predicated region
  $region42: #{top2gate.4} parent=0 // pred_check
    _
  $region43: #{top2gate.4} parent=0 // pred_check_branch
    %284 = sbr.rel (0) target = $region45
  $region44: #{top2gate.4} parent=0 // pred_region
    _
  $region45: #{top2gate.4} parent=0 // pred_fallthru
    _
  // Predicated region
  $region46: #{top2gate.4} parent=0 // pred_check
    _
  $region47: #{top2gate.4} parent=0 // pred_check_branch
    %286 = sbr.rel (0) target = $region49
  $region48: #{top2gate.4} parent=0 // pred_region
    _
  $region49: #{top2gate.4} parent=0 // pred_fallthru
    _
  // Predicated region
  $region50: #{top2gate.4} parent=0 // pred_check
    _
  $region51: #{top2gate.4} parent=0 // pred_check_branch
    %288 = sbr.rel (0) target = $region53
  $region52: #{top2gate.4} parent=0 // pred_region
    _
  $region53: #{top2gate.4} parent=0 // pred_fallthru
    _
  // Predicated region
  $region54: #{top2gate.4} parent=0 // pred_check
    _
  $region55: #{top2gate.4} parent=0 // pred_check_branch
    %290 = sbr.rel (0) target = $region57
  $region56: #{top2gate.4} parent=0 // pred_region
    _
  $region57: #{top2gate.4} parent=0 // pred_fallthru
    _

// kernel: top2gate.5
$region0: #{top2gate.5}
  #allocation0 [shape = 'u32[]', space=smem, size = 0x4, offset = 0x4, fixed_abs, tag = 'smem constant byte address 0x4 - core index']
  #allocation1 [shape = 'u32[72,128]{1,0:T(1,128)}', space=vmem, size = 0x9000, scoped, tag = 'internal scratch']
  %s0 = inlined_call_operand.vmem [shape: s32[16,1], index: 0, kind: input, shape index: {}]
  %s1 = inlined_call_operand.vmem [shape: s32[16,1], index: 1, kind: input, shape index: {}]
  %s2 = inlined_call_operand.vmem [shape: f32[16,1], index: 2, kind: input, shape index: {}]
  %s3 = inlined_call_operand.vmem [shape: f32[16,1], index: 3, kind: input, shape index: {}]
  %s4 = inlined_call_operand.vmem [shape: f32[16,32], index: 4, kind: output, shape index: {}]
  %s5 = sld [smem:[#allocation0]]
  $region26: #{top2gate.5} parent=0
    _
  %s7 = ssub.s32 1, %s5
  %s8 = scalar_select 0, %s7, %s5
  // Predicated region
  $region2: #{top2gate.5} parent=0 // pred_check
    _
  $region3: #{top2gate.5} parent=0 // pred_check_branch
    %10 = sbr.rel (0) target = $region5
  $region4: #{top2gate.5} parent=0 // pred_region
    _
  $region5: #{top2gate.5} parent=0 // pred_fallthru
    _
  // Predicated region
  $region6: #{top2gate.5} parent=0 // pred_check
    _
  $region7: #{top2gate.5} parent=0 // pred_check_branch
    %12 = sbr.rel (0) target = $region9
  $region8: #{top2gate.5} parent=0 // pred_region
    _
  $region9: #{top2gate.5} parent=0 // pred_fallthru
    _
  // Predicated region
  $region10: #{top2gate.5} parent=0 // pred_check
    _
  $region11: #{top2gate.5} parent=0 // pred_check_branch
    %14 = sbr.rel (0) target = $region13
  $region12: #{top2gate.5} parent=0 // pred_region
    _
  $region13: #{top2gate.5} parent=0 // pred_fallthru
    _
  // Predicated region
  $region14: #{top2gate.5} parent=0 // pred_check
    _
  $region15: #{top2gate.5} parent=0 // pred_check_branch
    %16 = sbr.rel (0) target = $region17
  $region16: #{top2gate.5} parent=0 // pred_region
    _
  $region17: #{top2gate.5} parent=0 // pred_fallthru
    _
  %v17 = vlaneseq
  %v18 = vand.u32 %v17, 127
  %v19 = vld [vmem:[%s0] sm:$0xff]
  %v20 = vld [vmem:[%s0 + $0x8] sm:$0xff]
  %v21 = vld [vmem:[%s1] sm:$0xff]
  %v22 = vld [vmem:[%s1 + $0x8] sm:$0xff]
  %v23 = vld [vmem:[%s2] sm:$0xff]
  %v24 = vld [vmem:[%s2 + $0x8] sm:$0xff]
  %v25 = vld [vmem:[%s3] sm:$0xff]
  %v26 = vld [vmem:[%s3 + $0x8] sm:$0xff]
  %27 = vset.pattern.permute.xlu0 0
  %28 = vperm.xlu0 %27, %v19
  %v29 = vpop.permute.xlu0 %28
  %30 = vset.pattern.permute.xlu0 0
  %31 = vperm.xlu0 %30, %v20
  %v32 = vpop.permute.xlu0 %31
  %vm33 = vcmp.eq.s32.totalorder %v18, %v29
  %vm34 = vcmp.eq.s32.totalorder %v18, %v32
  %36 = vset.pattern.permute.xlu0 0
  %37 = vperm.xlu0 %36, %v23
  %v38 = vpop.permute.xlu0 %37
  %41 = vset.pattern.permute.xlu0 0
  %42 = vperm.xlu0 %41, %v24
  %v43 = vpop.permute.xlu0 %42
  %v45 = vsel %vm33, %v38, 0.0
  %v46 = vsel %vm34, %v43, 0.0
  %47 = vset.pattern.permute.xlu0 0
  %48 = vperm.xlu0 %47, %v21
  %v49 = vpop.permute.xlu0 %48
  %50 = vset.pattern.permute.xlu0 0
  %51 = vperm.xlu0 %50, %v22
  %v52 = vpop.permute.xlu0 %51
  %vm53 = vcmp.eq.s32.totalorder %v18, %v49
  %vm54 = vcmp.eq.s32.totalorder %v18, %v52
  %56 = vset.pattern.permute.xlu0 0
  %57 = vperm.xlu0 %56, %v25
  %v58 = vpop.permute.xlu0 %57
  %61 = vset.pattern.permute.xlu0 0
  %62 = vperm.xlu0 %61, %v26
  %v63 = vpop.permute.xlu0 %62
  %v65 = vsel %vm53, %v58, 0.0
  %v66 = vsel %vm54, %v63, 0.0
  %v67 = vadd.f32 %v45, %v65
  %v68 = vadd.f32 %v46, %v66
  %vm69 = vcmask 261120
  %70 = vst.msk [vmem:[%s4] sm:$0xff] %vm69, %v67
  %71 = vst.msk [vmem:[%s4 + $0x8] sm:$0xff] %vm69, %v68
  // Predicated region
  $region18: #{top2gate.5} parent=0 // pred_check
    _
  $region19: #{top2gate.5} parent=0 // pred_check_branch
    %73 = sbr.rel (0) target = $region21
  $region20: #{top2gate.5} parent=0 // pred_region
    _
  $region21: #{top2gate.5} parent=0 // pred_fallthru
    _
  // Predicated region
  $region22: #{top2gate.5} parent=0 // pred_check
    _
  $region23: #{top2gate.5} parent=0 // pred_check_branch
    %75 = sbr.rel (0) target = $region25
  $region24: #{top2gate.5} parent=0 // pred_region
    _
  $region25: #{top2gate.5} parent=0 // pred_fallthru
    _

</llo_original>
